<compile_context>
chip_gen: v7x
topology: tpu7x:2x2x1
jax: 0.10.0
libtpu: 0.0.40
codegen_flags: <defaults>
</compile_context>

<pallas_src>
import functools

import jax
import jax.numpy as jnp
from jax.experimental import pallas as pl
from jax.experimental.pallas import tpu as pltpu


def _round_up(x, m):
    return -(-x // m) * m


# ---------------------------------------------------------------------------
# Shared fused body:
#   (TB, L, H) bf16 activations -> Conv1d(k, valid) -> global max pool -> sigmoid
#   -> Linear(128,50) -> sigmoid -> (BN folded) -> Linear(50,5) -> softmax
# Everything for TB batch elements stays in VMEM for the whole grid step.
# ---------------------------------------------------------------------------
def _forward_core(x, wc_ref, bc_ref, w1_ref, b1_ref, w2_ref, b2_ref, o_ref):
    TB, L, H = x.shape
    KH, C = wc_ref.shape
    K = KH // H
    L_out = L - K + 1                                   # "valid" conv, stride 1

    # im2col: K shifted views stacked along the contraction axis -> (TB, L_out, K*H).
    # TODO(synk): if the bundle dump shows these sublane-offset slices on the critical
    # path, switch to the (H, K*C) tap-plane formulation; at K=3 it is expected noise.
    cols = jnp.concatenate([x[:, k:k + L_out, :] for k in range(K)], axis=-1)

    # ONE 2-D MXU matmul (large M = TB*L_out), bf16 operands, f32 accumulation.
    conv = jnp.dot(cols.reshape(TB * L_out, KH), wc_ref[...],
                   preferred_element_type=jnp.float32).reshape(TB, L_out, C)

    # Global max pool BEFORE bias + sigmoid (exact: bias is constant over L and the
    # sigmoid is monotone, so max(sigmoid(a + b)) == sigmoid(max(a) + b)).
    pooled = jnp.max(conv, axis=1) + bc_ref[...]        # (TB, C)
    feat = jax.nn.sigmoid(pooled).astype(jnp.bfloat16)

    # Head: Linear -> (Dropout: eval identity) -> Sigmoid -> (BN folded in w2/b2) -> Linear.
    h = jax.nn.sigmoid(
        jnp.dot(feat, w1_ref[...], preferred_element_type=jnp.float32) + b1_ref[...]
    ).astype(jnp.bfloat16)
    logits = jnp.dot(h, w2_ref[...], preferred_element_type=jnp.float32) + b2_ref[...]

    # Stabilized softmax(dim=-1); approx reciprocal uses the (free) EUP slot.
    m = jnp.max(logits, axis=-1, keepdims=True)
    e = jnp.exp(logits - m)
    o_ref[...] = e * pl.reciprocal(jnp.sum(e, axis=-1, keepdims=True), approx=True)


def fused_kernel_act(x_ref, wc_ref, bc_ref, w1_ref, b1_ref, w2_ref, b2_ref, o_ref):
    # x_ref: (TB, L, H) bf16 embedded tokens (gathered outside the kernel).
    _forward_core(x_ref[...], wc_ref, bc_ref, w1_ref, b1_ref, w2_ref, b2_ref, o_ref)


def fused_kernel_embed(tok_ref, emb_ref, wc_ref, bc_ref, w1_ref, b1_ref, w2_ref,
                       b2_ref, o_ref):
    # tok_ref: (TB, L) int32 tokens; emb_ref: (V, H) bf16 VMEM-resident table.
    tok = tok_ref[...]
    TB, L = tok.shape
    V, H = emb_ref.shape
    # One-hot bf16 matmul against the table == exact row gather, done on the MXU.
    onehot = (tok[:, :, None] ==
              jax.lax.broadcasted_iota(jnp.int32, (TB, L, V), 2)).astype(jnp.bfloat16)
    x = jnp.dot(onehot.reshape(TB * L, V), emb_ref[...],
                preferred_element_type=jnp.float32)
    _forward_core(x.astype(jnp.bfloat16).reshape(TB, L, H),
                  wc_ref, bc_ref, w1_ref, b1_ref, w2_ref, b2_ref, o_ref)


def cnn_global_max_pooling(tokens, params, *, batch_tile=256,
                           fuse_embedding_max_vocab=1024):
    """Full forward pass. tokens: (B, L) int. Returns softmax probs, squeezed like torch."""
    emb_tbl = params["embedding"].astype(jnp.bfloat16)   # cast the table ONCE (bf16 HBM traffic)
    B, L = tokens.shape
    V, H = emb_tbl.shape
    K, _, C = params["w_conv"].shape
    M = params["w1"].shape[1]
    N = params["w2"].shape[1]
    L_out = L - K + 1

    # --- batch tiling: big tiles to amortize the ~600-cycle grid-step overhead, but
    #     at least 2 grid steps for mid-sized batches so v7x's two TCs both get work.
    if B <= 8:
        TB = B
    else:
        TB = min(batch_tile, _round_up(-(-B // 2), 8))
    B_pad = _round_up(B, TB)
    grid = (B_pad // TB,)

    tok = tokens.astype(jnp.int32)
    if B_pad != B:
        tok = jnp.pad(tok, ((0, B_pad - B), (0, 0)))

    # --- weight prep (host side, once) ---
    w_conv = params["w_conv"].reshape(K * H, C).astype(jnp.bfloat16)   # im2col layout
    b_conv = params["b_conv"].astype(jnp.float32).reshape(1, C)
    # Fold eval-mode BatchNorm1d (sits between the sigmoid and the last Linear) into
    # the last Linear: BN(h) @ w2 + b2 == h @ (scale[:,None]*w2) + (shift @ w2 + b2).
    eps = 1e-5
    scale = (params["bn_gamma"] * jax.lax.rsqrt(params["bn_var"] + eps)).reshape(-1)
    shift = params["bn_beta"].reshape(-1) - params["bn_mean"].reshape(-1) * scale
    w2 = (params["w2"] * scale[:, None]).astype(jnp.bfloat16)
    b2 = (params["b2"].reshape(-1) + shift @ params["w2"]).reshape(1, N).astype(jnp.float32)
    w1 = params["w1"].astype(jnp.bfloat16)
    b1 = params["b1"].astype(jnp.float32).reshape(1, M)

    # --- explicit VMEM budget (don't inherit generation-dependent scoped defaults);
    #     clamp to 48 MiB so it stays under v7x's 64 MiB physical VMEM.
    est_bytes = (2 * TB * L * H * 2            # double-buffered activation / token tile
                 + TB * L_out * K * H * 2      # im2col cols (bf16)
                 + TB * L_out * C * 4          # conv intermediate (f32)
                 + TB * L * V * 2              # one-hot (fused-embedding path only)
                 + (K * H * C + C * M + M * N + V * H) * 2
                 + 4 * (C + M + N))
    vmem_limit = int(min(max(32 * 1024 * 1024, 2 * est_bytes), 48 * 1024 * 1024))

    common_in_specs = [
        pl.BlockSpec((K * H, C), lambda i: (0, 0)),       # weights: VMEM-resident
        pl.BlockSpec((1, C), lambda i: (0, 0)),
        pl.BlockSpec((C, M), lambda i: (0, 0)),
        pl.BlockSpec((1, M), lambda i: (0, 0)),
        pl.BlockSpec((M, N), lambda i: (0, 0)),
        pl.BlockSpec((1, N), lambda i: (0, 0)),
    ]
    out_spec = pl.BlockSpec((TB, N), lambda i: (i, 0))
    cparams = pltpu.CompilerParams(dimension_semantics=("parallel",),
                                   vmem_limit_bytes=vmem_limit)

    fuse_embed = (V <= fuse_embedding_max_vocab
                  and TB * L * V * 2 <= 8 * 1024 * 1024)  # keep the one-hot small

    if fuse_embed:
        out = pl.pallas_call(
            fused_kernel_embed,
            out_shape=jax.ShapeDtypeStruct((B_pad, N), jnp.float32),
            grid=grid,
            in_specs=[pl.BlockSpec((TB, L), lambda i: (i, 0)),
                      pl.BlockSpec((V, H), lambda i: (0, 0))] + common_in_specs,
            out_specs=out_spec,
            compiler_params=cparams,
        )(tok, emb_tbl, w_conv, b_conv, w1, b1, w2, b2)
    else:
        # TODO(synk): for large vocabularies the embedding row-gather stays in XLA
        # (bf16 table halves its HBM traffic); an in-kernel DMA gather could also drop
        # the (B, L, H) activation round-trip.
        x = emb_tbl[tok]                                   # (B_pad, L, H) bf16
        out = pl.pallas_call(
            fused_kernel_act,
            out_shape=jax.ShapeDtypeStruct((B_pad, N), jnp.float32),
            grid=grid,
            in_specs=[pl.BlockSpec((TB, L, H), lambda i: (i, 0, 0))] + common_in_specs,
            out_specs=out_spec,
            compiler_params=cparams,
        )(x, w_conv, b_conv, w1, b1, w2, b2)

    return jnp.squeeze(out[:B])                            # matches torch .squeeze()


# ---------------------------------------------------------------------------
# Un-fused pure-JAX f32 reference (original op order) for correctness checking.
# ---------------------------------------------------------------------------
def reference_forward(tokens, params):
    emb = params["embedding"][tokens]                      # (B, L, H) f32
    K = params["w_conv"].shape[0]
    L_out = emb.shape[1] - K + 1
    acc = jnp.zeros((emb.shape[0], L_out, params["w_conv"].shape[2]), jnp.float32)
    for k in range(K):
        acc = acc + jnp.einsum('blh,hc->blc', emb[:, k:k + L_out, :], params["w_conv"][k])
    acc = acc + params["b_conv"][None, :, :]
    feat = jnp.max(jax.nn.sigmoid(acc), axis=1)            # sigmoid then pool (original order)
    h = jax.nn.sigmoid(feat @ params["w1"] + params["b1"])  # dropout: eval identity
    eps = 1e-5
    h = (h - params["bn_mean"]) * jax.lax.rsqrt(params["bn_var"] + eps)
    h = h * params["bn_gamma"] + params["bn_beta"]
    logits = h @ params["w2"] + params["b2"]
    return jax.nn.softmax(logits, axis=-1)


def init_params(key, n_tokens, hid_size, conv_out=128, mid=50, n_classes=5):
    ks = jax.random.split(key, 6)
    return {
        "embedding": jax.random.normal(ks[0], (n_tokens, hid_size), jnp.float32) * 0.1,
        # conv weight stored channels-last: (K, H, C_out)
        "w_conv": jax.random.normal(ks[1], (3, hid_size, conv_out), jnp.float32) * 0.1,
        "b_conv": jax.random.normal(ks[2], (1, conv_out), jnp.float32) * 0.1,
        "w1": jax.random.normal(ks[3], (conv_out, mid), jnp.float32) * 0.1,
        "b1": jax.random.normal(ks[4], (1, mid), jnp.float32) * 0.1,
        "bn_gamma": jnp.ones((1, mid), jnp.float32),
        "bn_beta": jnp.zeros((1, mid), jnp.float32),
        "bn_mean": jnp.zeros((1, mid), jnp.float32),        # eval-mode running stats
        "bn_var": jnp.ones((1, mid), jnp.float32),
        "w2": jax.random.normal(ks[5], (mid, n_classes), jnp.float32) * 0.1,
        "b2": jnp.zeros((1, n_classes), jnp.float32),
    }


if __name__ == "__main__":
    key = jax.random.PRNGKey(0)
    n_tokens, hid_size = 32, 32
    B, L = 2, 16

    k_tok, k_par = jax.random.split(key)
    tokens = jax.random.randint(k_tok, (B, L), 0, n_tokens, dtype=jnp.int32)
    params = init_params(k_par, n_tokens, hid_size)

    ref = reference_forward(tokens, params)

    # Path 1: fully fused kernel (one-hot embedding inside the kernel).
    out = jax.block_until_ready(jax.jit(cnn_global_max_pooling)(tokens, params))
    assert out.shape == (B, 5), out.shape
    assert bool(jnp.all(jnp.isfinite(out)))
    # softmax rows sum to ~1 (approx reciprocal => ~2^-12 relative error on the denom)
    assert bool(jnp.allclose(jnp.sum(out, axis=-1), 1.0, atol=2e-3))
    # bf16 matmul operands (intentional) => loose tolerance vs the f32 reference
    assert bool(jnp.allclose(out, ref, atol=2e-2))

    # Path 2: large-vocab fallback (bf16 XLA gather + activation-input kernel).
    gather_fwd = jax.jit(functools.partial(cnn_global_max_pooling,
                                           fuse_embedding_max_vocab=0))
    out2 = jax.block_until_ready(gather_fwd(tokens, params))
    assert out2.shape == (B, 5), out2.shape
    assert bool(jnp.allclose(out2, ref, atol=2e-2))

    print("KERNEL_OK")
</pallas_src>

<mosaic_0001>
module attributes {stable_mosaic.version = 11 : i64} {
  func.func @fused_kernel_embed(%arg0: i32, %arg1: memref<2x16xi32, #tpu.memory_space<vmem>>, %arg2: memref<32x32xbf16, #tpu.memory_space<vmem>>, %arg3: memref<96x128xbf16, #tpu.memory_space<vmem>>, %arg4: memref<1x128xf32, #tpu.memory_space<vmem>>, %arg5: memref<128x50xbf16, #tpu.memory_space<vmem>>, %arg6: memref<1x50xf32, #tpu.memory_space<vmem>>, %arg7: memref<50x5xbf16, #tpu.memory_space<vmem>>, %arg8: memref<1x5xf32, #tpu.memory_space<vmem>>, %arg9: memref<2x5xf32, #tpu.memory_space<vmem>>) attributes {dimension_semantics = [#tpu.dimension_semantics<parallel>], iteration_bounds = array<i64: 1>, scalar_prefetch = 0 : i64, scratch_operands = 0 : i64, tpu.core_type = #tpu.core_type<tc>, window_params = [{transform_indices = @transform_0, window_bounds = array<i64: 2, 16>}, {pipeline_mode = #tpu.pipeline_mode<synchronous>, transform_indices = @transform_1, window_bounds = array<i64: 32, 32>}, {pipeline_mode = #tpu.pipeline_mode<synchronous>, transform_indices = @transform_2, window_bounds = array<i64: 96, 128>}, {pipeline_mode = #tpu.pipeline_mode<synchronous>, transform_indices = @transform_3, window_bounds = array<i64: 1, 128>}, {pipeline_mode = #tpu.pipeline_mode<synchronous>, transform_indices = @transform_4, window_bounds = array<i64: 128, 50>}, {pipeline_mode = #tpu.pipeline_mode<synchronous>, transform_indices = @transform_5, window_bounds = array<i64: 1, 50>}, {pipeline_mode = #tpu.pipeline_mode<synchronous>, transform_indices = @transform_6, window_bounds = array<i64: 50, 5>}, {pipeline_mode = #tpu.pipeline_mode<synchronous>, transform_indices = @transform_7, window_bounds = array<i64: 1, 5>}, {transform_indices = @transform_8, window_bounds = array<i64: 2, 5>}]} {
    %c0 = arith.constant 0 : index
    %c0_0 = arith.constant 0 : index
    %0 = vector.load %arg1[%c0, %c0_0] : memref<2x16xi32, #tpu.memory_space<vmem>>, vector<2x16xi32>
    %1 = vector.shape_cast %0 : vector<2x16xi32> to vector<2x16x1xi32>
    %2 = tpu.iota {dimensions = array<i32: 2>} : vector<2x16x32xi32>
    %3 = vector.broadcast %1 : vector<2x16x1xi32> to vector<2x16x32xi32>
    %4 = arith.cmpi eq, %3, %2 : vector<2x16x32xi32>
    %5 = arith.extui %4 : vector<2x16x32xi1> to vector<2x16x32xi32>
    %6 = arith.sitofp %5 : vector<2x16x32xi32> to vector<2x16x32xf32>
    %7 = arith.truncf %6 : vector<2x16x32xf32> to vector<2x16x32xbf16>
    %8 = vector.shape_cast %7 : vector<2x16x32xbf16> to vector<32x32xbf16>
    %c0_1 = arith.constant 0 : index
    %c0_2 = arith.constant 0 : index
    %9 = vector.load %arg2[%c0_1, %c0_2] : memref<32x32xbf16, #tpu.memory_space<vmem>>, vector<32x32xbf16>
    %cst = arith.constant dense<0.000000e+00> : vector<32x32xf32>
    %10 = tpu.matmul %8, %9, %cst {dimension_numbers = #tpu.dot_dimension_numbers<[1], [0], [0], [1], [0, 0, 1, 1], [], []>} : vector<32x32xbf16>, vector<32x32xbf16>, vector<32x32xf32> -> vector<32x32xf32>
    %11 = arith.truncf %10 : vector<32x32xf32> to vector<32x32xbf16>
    %12 = vector.shape_cast %11 : vector<32x32xbf16> to vector<2x16x32xbf16>
    %13 = vector.extract_strided_slice %12 {offsets = [0, 0, 0], sizes = [2, 14, 32], strides = [1, 1, 1]} : vector<2x16x32xbf16> to vector<2x14x32xbf16>
    %14 = vector.extract_strided_slice %12 {offsets = [0, 1, 0], sizes = [2, 14, 32], strides = [1, 1, 1]} : vector<2x16x32xbf16> to vector<2x14x32xbf16>
    %15 = vector.extract_strided_slice %12 {offsets = [0, 2, 0], sizes = [2, 14, 32], strides = [1, 1, 1]} : vector<2x16x32xbf16> to vector<2x14x32xbf16>
    %16 = tpu.concatenate %13, %14, %15 in 2 : vector<2x14x32xbf16>, vector<2x14x32xbf16>, vector<2x14x32xbf16> -> vector<2x14x96xbf16>
    %17 = vector.shape_cast %16 : vector<2x14x96xbf16> to vector<28x96xbf16>
    %c0_3 = arith.constant 0 : index
    %c0_4 = arith.constant 0 : index
    %18 = vector.load %arg3[%c0_3, %c0_4] : memref<96x128xbf16, #tpu.memory_space<vmem>>, vector<96x128xbf16>
    %cst_5 = arith.constant dense<0.000000e+00> : vector<28x128xf32>
    %19 = tpu.matmul %17, %18, %cst_5 {dimension_numbers = #tpu.dot_dimension_numbers<[1], [0], [0], [1], [0, 0, 1, 1], [], []>} : vector<28x96xbf16>, vector<96x128xbf16>, vector<28x128xf32> -> vector<28x128xf32>
    %20 = vector.shape_cast %19 : vector<28x128xf32> to vector<2x14x128xf32>
    %cst_6 = arith.constant dense<0xFF800000> : vector<2x128xf32>
    %21 = vector.multi_reduction <maximumf>, %20, %cst_6 [1] : vector<2x14x128xf32> to vector<2x128xf32>
    %c0_7 = arith.constant 0 : index
    %c0_8 = arith.constant 0 : index
    %22 = vector.load %arg4[%c0_7, %c0_8] : memref<1x128xf32, #tpu.memory_space<vmem>>, vector<1x128xf32>
    %23 = vector.broadcast %22 : vector<1x128xf32> to vector<2x128xf32>
    %24 = arith.addf %21, %23 : vector<2x128xf32>
    %25 = arith.negf %24 : vector<2x128xf32>
    %26 = math.exp %25 : vector<2x128xf32>
    %cst_9 = arith.constant 1.000000e+00 : f32
    %27 = vector.broadcast %cst_9 : f32 to vector<2x128xf32>
    %28 = arith.addf %27, %26 : vector<2x128xf32>
    %29 = arith.divf %27, %28 : vector<2x128xf32>
    %30 = arith.truncf %29 : vector<2x128xf32> to vector<2x128xbf16>
    %c0_10 = arith.constant 0 : index
    %c0_11 = arith.constant 0 : index
    %31 = vector.load %arg5[%c0_10, %c0_11] : memref<128x50xbf16, #tpu.memory_space<vmem>>, vector<128x50xbf16>
    %cst_12 = arith.constant dense<0.000000e+00> : vector<2x50xf32>
    %32 = tpu.matmul %30, %31, %cst_12 {dimension_numbers = #tpu.dot_dimension_numbers<[1], [0], [0], [1], [0, 0, 1, 1], [], []>} : vector<2x128xbf16>, vector<128x50xbf16>, vector<2x50xf32> -> vector<2x50xf32>
    %c0_13 = arith.constant 0 : index
    %c0_14 = arith.constant 0 : index
    %33 = vector.load %arg6[%c0_13, %c0_14] : memref<1x50xf32, #tpu.memory_space<vmem>>, vector<1x50xf32>
    %34 = vector.broadcast %33 : vector<1x50xf32> to vector<2x50xf32>
    %35 = arith.addf %32, %34 : vector<2x50xf32>
    %36 = arith.negf %35 : vector<2x50xf32>
    %37 = math.exp %36 : vector<2x50xf32>
    %cst_15 = arith.constant 1.000000e+00 : f32
    %38 = vector.broadcast %cst_15 : f32 to vector<2x50xf32>
    %39 = arith.addf %38, %37 : vector<2x50xf32>
    %40 = arith.divf %38, %39 : vector<2x50xf32>
    %41 = arith.truncf %40 : vector<2x50xf32> to vector<2x50xbf16>
    %c0_16 = arith.constant 0 : index
    %c0_17 = arith.constant 0 : index
    %42 = vector.load %arg7[%c0_16, %c0_17] : memref<50x5xbf16, #tpu.memory_space<vmem>>, vector<50x5xbf16>
    %cst_18 = arith.constant dense<0.000000e+00> : vector<2x5xf32>
    %43 = tpu.matmul %41, %42, %cst_18 {dimension_numbers = #tpu.dot_dimension_numbers<[1], [0], [0], [1], [0, 0, 1, 1], [], []>} : vector<2x50xbf16>, vector<50x5xbf16>, vector<2x5xf32> -> vector<2x5xf32>
    %c0_19 = arith.constant 0 : index
    %c0_20 = arith.constant 0 : index
    %44 = vector.load %arg8[%c0_19, %c0_20] : memref<1x5xf32, #tpu.memory_space<vmem>>, vector<1x5xf32>
    %45 = vector.broadcast %44 : vector<1x5xf32> to vector<2x5xf32>
    %46 = arith.addf %43, %45 : vector<2x5xf32>
    %cst_21 = arith.constant dense<0xFF800000> : vector<2xf32>
    %47 = vector.multi_reduction <maximumf>, %46, %cst_21 [1] : vector<2x5xf32> to vector<2xf32>
    %48 = vector.shape_cast %47 : vector<2xf32> to vector<2x1xf32>
    %49 = vector.broadcast %48 : vector<2x1xf32> to vector<2x5xf32>
    %50 = arith.subf %46, %49 : vector<2x5xf32>
    %51 = math.exp %50 : vector<2x5xf32>
    %cst_22 = arith.constant dense<0.000000e+00> : vector<2xf32>
    %52 = vector.multi_reduction <add>, %51, %cst_22 [1] : vector<2x5xf32> to vector<2xf32>
    %53 = vector.shape_cast %52 : vector<2xf32> to vector<2x1xf32>
    %54 = tpu.reciprocal %53 {approx = true} : vector<2x1xf32> -> vector<2x1xf32>
    %55 = vector.broadcast %54 : vector<2x1xf32> to vector<2x5xf32>
    %56 = arith.mulf %51, %55 : vector<2x5xf32>
    %c0_23 = arith.constant 0 : index
    %c0_24 = arith.constant 0 : index
    %57 = vector.load %arg9[%c0_23, %c0_24] : memref<2x5xf32, #tpu.memory_space<vmem>>, vector<2x5xf32>
    tpu.vector_store %arg9[%c0_23, %c0_24], %56 {strides = array<i32>} : memref<2x5xf32, #tpu.memory_space<vmem>>, vector<2x5xf32>,
    return
  }
  func.func @transform_0(%arg0: i32) -> (i32, i32) {
    %c0_i32 = arith.constant 0 : i32
    %c0_i32_0 = arith.constant 0 : i32
    return %arg0, %c0_i32 : i32, i32
  }
  func.func @transform_1(%arg0: i32) -> (i32, i32) {
    %c0_i32 = arith.constant 0 : i32
    %c0_i32_0 = arith.constant 0 : i32
    %c0_i32_1 = arith.constant 0 : i32
    return %c0_i32, %c0_i32_0 : i32, i32
  }
  func.func @transform_2(%arg0: i32) -> (i32, i32) {
    %c0_i32 = arith.constant 0 : i32
    %c0_i32_0 = arith.constant 0 : i32
    %c0_i32_1 = arith.constant 0 : i32
    return %c0_i32, %c0_i32_0 : i32, i32
  }
  func.func @transform_3(%arg0: i32) -> (i32, i32) {
    %c0_i32 = arith.constant 0 : i32
    %c0_i32_0 = arith.constant 0 : i32
    %c0_i32_1 = arith.constant 0 : i32
    return %c0_i32, %c0_i32_0 : i32, i32
  }
  func.func @transform_4(%arg0: i32) -> (i32, i32) {
    %c0_i32 = arith.constant 0 : i32
    %c0_i32_0 = arith.constant 0 : i32
    %c0_i32_1 = arith.constant 0 : i32
    return %c0_i32, %c0_i32_0 : i32, i32
  }
  func.func @transform_5(%arg0: i32) -> (i32, i32) {
    %c0_i32 = arith.constant 0 : i32
    %c0_i32_0 = arith.constant 0 : i32
    %c0_i32_1 = arith.constant 0 : i32
    return %c0_i32, %c0_i32_0 : i32, i32
  }
  func.func @transform_6(%arg0: i32) -> (i32, i32) {
    %c0_i32 = arith.constant 0 : i32
    %c0_i32_0 = arith.constant 0 : i32
    %c0_i32_1 = arith.constant 0 : i32
    return %c0_i32, %c0_i32_0 : i32, i32
  }
  func.func @transform_7(%arg0: i32) -> (i32, i32) {
    %c0_i32 = arith.constant 0 : i32
    %c0_i32_0 = arith.constant 0 : i32
    %c0_i32_1 = arith.constant 0 : i32
    return %c0_i32, %c0_i32_0 : i32, i32
  }
  func.func @transform_8(%arg0: i32) -> (i32, i32) {
    %c0_i32 = arith.constant 0 : i32
    %c0_i32_0 = arith.constant 0 : i32
    return %arg0, %c0_i32 : i32, i32
  }
}

</mosaic_0001>

<llo_original>
// kernel: cnn_global_max_pooling.1
$region0: #{cnn_global_max_pooling.1}
  #allocation0 [shape = 'u32[]', space=smem, size = 0x4, offset = 0x4, fixed_abs, tag = 'smem constant byte address 0x4 - core index']
  #allocation1 [shape = 'u32[144,128]{1,0:T(1,128)}', space=vmem, size = 0x12000, scoped, tag = 'internal scratch']
  %s0 = inlined_call_operand.vmem [shape: s32[2,16], index: 0, kind: input, shape index: {}]
  %s1 = inlined_call_operand.vmem [shape: bf16[32,32], index: 1, kind: input, shape index: {}]
  %s2 = inlined_call_operand.vmem [shape: bf16[96,128], index: 2, kind: input, shape index: {}]
  %s3 = inlined_call_operand.vmem [shape: f32[1,128], index: 3, kind: input, shape index: {}]
  %s4 = inlined_call_operand.vmem [shape: bf16[128,50], index: 4, kind: input, shape index: {}]
  %s5 = inlined_call_operand.vmem [shape: f32[1,50], index: 5, kind: input, shape index: {}]
  %s6 = inlined_call_operand.vmem [shape: bf16[50,5], index: 6, kind: input, shape index: {}]
  %s7 = inlined_call_operand.vmem [shape: f32[1,5], index: 7, kind: input, shape index: {}]
  %s8 = inlined_call_operand.hbm [shape: f32[2,5], index: 8, kind: output, shape index: {}]
  %s9 = sld [smem:[#allocation0]]
  $region42: #{cnn_global_max_pooling.1} parent=0
    _
  %s11 = ssub.s32 1, %s9
  %s12 = scalar_select 0, %s11, %s9
  $region1: #{cnn_global_max_pooling.1} parent=0
    #allocation2 [shape = 'u8[1024]{0}', space=vmem, size = 0x400, scoped, tag = 'output window, operand 0, single buffered']
    #allocation3 [shape = 's32[1]{0}', space=sflag, size = 0x4, scoped, tag = 'scoped memory for cnn_global_max_pooling.1']
    %13 = vsyncpa [#allocation3], 0
    // Predicated region
    $region2: #{cnn_global_max_pooling.1} parent=1 // pred_check
      _
    $region3: #{cnn_global_max_pooling.1} parent=1 // pred_check_branch
      %15 = sbr.rel (0) target = $region5
    $region4: #{cnn_global_max_pooling.1} parent=1 // pred_region
      _
    $region5: #{cnn_global_max_pooling.1} parent=1 // pred_fallthru
      _
    // Predicated region
    $region6: #{cnn_global_max_pooling.1} parent=1 // pred_check
      _
    $region7: #{cnn_global_max_pooling.1} parent=1 // pred_check_branch
      %17 = sbr.rel (0) target = $region9
    $region8: #{cnn_global_max_pooling.1} parent=1 // pred_region
      _
    $region9: #{cnn_global_max_pooling.1} parent=1 // pred_fallthru
      _
    // Predicated region
    $region10: #{cnn_global_max_pooling.1} parent=1 // pred_check
      _
    $region11: #{cnn_global_max_pooling.1} parent=1 // pred_check_branch
      %19 = sbr.rel (0) target = $region13
    $region12: #{cnn_global_max_pooling.1} parent=1 // pred_region
      _
    $region13: #{cnn_global_max_pooling.1} parent=1 // pred_fallthru
      _
    // Predicated region
    $region14: #{cnn_global_max_pooling.1} parent=1 // pred_check
      _
    $region15: #{cnn_global_max_pooling.1} parent=1 // pred_check_branch
      %21 = sbr.rel (0) target = $region17
    $region16: #{cnn_global_max_pooling.1} parent=1 // pred_region
      _
    $region17: #{cnn_global_max_pooling.1} parent=1 // pred_fallthru
      _
    // Predicated region
    $region18: #{cnn_global_max_pooling.1} parent=1 // pred_check
      _
    $region19: #{cnn_global_max_pooling.1} parent=1 // pred_check_branch
      %23 = sbr.rel (0) target = $region21
    $region20: #{cnn_global_max_pooling.1} parent=1 // pred_region
      _
    $region21: #{cnn_global_max_pooling.1} parent=1 // pred_fallthru
      _
    // Predicated region
    $region22: #{cnn_global_max_pooling.1} parent=1 // pred_check
      _
    $region23: #{cnn_global_max_pooling.1} parent=1 // pred_check_branch
      %25 = sbr.rel (0) target = $region25
    $region24: #{cnn_global_max_pooling.1} parent=1 // pred_region
      _
    $region25: #{cnn_global_max_pooling.1} parent=1 // pred_fallthru
      _
    // Predicated region
    $region26: #{cnn_global_max_pooling.1} parent=1 // pred_check
      _
    $region27: #{cnn_global_max_pooling.1} parent=1 // pred_check_branch
      %27 = sbr.rel (0) target = $region29
    $region28: #{cnn_global_max_pooling.1} parent=1 // pred_region
      _
    $region29: #{cnn_global_max_pooling.1} parent=1 // pred_fallthru
      _
    // Predicated region
    $region30: #{cnn_global_max_pooling.1} parent=1 // pred_check
      _
    $region31: #{cnn_global_max_pooling.1} parent=1 // pred_check_branch
      %29 = sbr.rel (0) target = $region33
    $region32: #{cnn_global_max_pooling.1} parent=1 // pred_region
      _
    $region33: #{cnn_global_max_pooling.1} parent=1 // pred_fallthru
      _
    %v31 = vld [vmem:[%s0] sm:$0x3]
    %v32 = vlaneseq
    %v33 = vshrl.u32 %v32, 7
    %v34 = vsub.s32 0, %v33
    %v35 = vrot.slane %v31, %v34
    %37 = vbcast.lane.b32.xlu0 %v35, 256
    %v38 = vpop.permute.xlu0 %37
    %s40 = sor.u32 256, 8
    %41 = vbcast.lane.b32.xlu0 %v35, %s40
    %v42 = vpop.permute.xlu0 %41
    %v43 = vlaneseq
    %v44 = vshrl.u32 %v43, 7
    %v45 = vsub.s32 1, %v44
    %v46 = vrot.slane %v31, %v45
    %48 = vbcast.lane.b32.xlu0 %v46, 256
    %v49 = vpop.permute.xlu0 %48
    %s51 = sor.u32 256, 8
    %52 = vbcast.lane.b32.xlu0 %v46, %s51
    %v53 = vpop.permute.xlu0 %52
    %v54 = vlaneseq
    %v55 = vand.u32 %v54, 127
    %vm56 = vcmp.eq.s32.totalorder %v38, %v55
    %vm57 = vcmp.eq.s32.totalorder %v42, %v55
    %vm58 = vcmp.eq.s32.totalorder %v49, %v55
    %vm59 = vcmp.eq.s32.totalorder %v53, %v55
    %v60 = vsel %vm56, 1, 0
    %v61 = vsel %vm57, 1, 0
    %v62 = vsel %vm58, 1, 0
    %v63 = vsel %vm59, 1, 0
    %v64 = vcvt.s32.f32 %v60
    %v65 = vcvt.s32.f32 %v61
    %v66 = vcvt.s32.f32 %v62
    %v67 = vcvt.s32.f32 %v63
    %v68 = vpack.c.bf16 %v65, %v64
    %v69 = vpack.c.bf16 %v67, %v66
    %v70 = vld [vmem:[%s1] sm:$0xf]
    %v71 = vld [vmem:[%s1 + $0x4] sm:$0xf]
    %v72 = vld [vmem:[%s1 + $0x8] sm:$0xf]
    %v73 = vld [vmem:[%s1 + $0xc] sm:$0xf]
    %v78 = vunpack.c.l.b16 %v70
    %v79 = vunpack.c.l.b16 %v71
    %v80 = vunpack.c.l.b16 %v72
    %v81 = vunpack.c.l.b16 %v73
    %v82 = vpack.c.b16 %v79, %v78
    %v83 = vpack.c.b16 %v81, %v80
    %vm86 = vcmask 261120
    %v88 = vsel %vm86, %v68, 0
    %v91 = vsel %vm86, %v69, 0
    %93 = vmatprep.subr.bf16.mxu0 0
    %94 = vmatpush1.bf16.msra.mxu0 %v82
    %95 = vmatprep.subr.bf16.mxu0 0
    %96 = vmatpush1.bf16.msra.mxu0 %v83
    %97 = vmatprep.subr.bf16.mxu0 0
    %98 = vmatpush1.bf16.msra.mxu0 0
    %99 = vmatprep.subr.bf16.mxu0 0
    %100 = vmatpush1.bf16.msra.mxu0 0
    %101 = vmatprep.subr.bf16.mxu0 0
    %102 = vmatpush1.bf16.msra.mxu0 0
    %103 = vmatprep.subr.bf16.mxu0 0
    %104 = vmatpush1.bf16.msra.mxu0 0
    %105 = vmatprep.subr.bf16.mxu0 0
    %106 = vmatpush1.bf16.msra.mxu0 0
    %107 = vmatprep.subr.bf16.mxu0 0
    %108 = vmatpush1.bf16.msra.mxu0 0
    %109 = vmatprep.subr.bf16.mxu0 0
    %110 = vmatpush1.bf16.msra.mxu0 0
    %111 = vmatprep.subr.bf16.mxu0 0
    %112 = vmatpush1.bf16.msra.mxu0 0
    %113 = vmatprep.subr.bf16.mxu0 0
    %114 = vmatpush1.bf16.msra.mxu0 0
    %115 = vmatprep.subr.bf16.mxu0 0
    %116 = vmatpush1.bf16.msra.mxu0 0
    %117 = vmatprep.subr.bf16.mxu0 0
    %118 = vmatpush1.bf16.msra.mxu0 0
    %119 = vmatprep.subr.bf16.mxu0 0
    %120 = vmatpush1.bf16.msra.mxu0 0
    %121 = vmatprep.subr.bf16.mxu0 0
    %122 = vmatpush1.bf16.msra.mxu0 0
    %123 = vmatprep.subr.bf16.mxu0 0
    %124 = vmatpush1.bf16.msra.mxu0 0
    %125 = vmatprep.mubr.bf16.mxu0 0
    %126 = vmatmul.mubr.bf16.gmra.mrb[0].mxu0 %v88
    %v127 = vpop.f32.mrb[0].mxu0
    %v128 = vadd.f32 0.0, %v127
    %v129 = vpop.f32.mrb[0].mxu0
    %v130 = vpop.f32.mrb[0].mxu0
    %v131 = vadd.f32 0.0, %v130
    %v132 = vpop.f32.mrb[0].mxu0
    %133 = vmatprep.mubr.bf16.mxu0 0
    %134 = vmatmul.mubr.bf16.gmra.mrb[0].mxu0 %v91
    %v135 = vpop.f32.mrb[0].mxu0
    %v136 = vadd.f32 0.0, %v135
    %v137 = vpop.f32.mrb[0].mxu0
    %v138 = vpop.f32.mrb[0].mxu0
    %v139 = vadd.f32 0.0, %v138
    %v140 = vpop.f32.mrb[0].mxu0
    %141 = vdwg.mxu0
    %v142 = vpack.c.bf16 %v131, %v128
    %v143 = vpack.c.bf16 %v139, %v136
    %v145 = vshrl.u32 %v142, 16
    %v147 = vshll.u32 %v142, 16
    %v149 = vrot.slane %v147, 1
    %v150 = vor.u32 %v145, %v149
    %v152 = vshrl.u32 %v143, 16
    %v154 = vshll.u32 %v143, 16
    %v156 = vrot.slane %v154, 1
    %v157 = vor.u32 %v152, %v156
    %158 = vrot.lane.b32.xlu0 %v150, 32
    %v159 = vpop.permute.xlu0 %158
    %160 = vrot.lane.b32.xlu0 %v157, 32
    %v161 = vpop.permute.xlu0 %160
    %v164 = vrot.slane %v142, 1
    %v165 = vrot.slane %v143, 1
    %166 = vrot.lane.b32.xlu0 %v164, 64
    %v167 = vpop.permute.xlu0 %166
    %168 = vrot.lane.b32.xlu0 %v165, 64
    %v169 = vpop.permute.xlu0 %168
    %v171 = vsel %vm86, %v142, %v159
    %v173 = vsel %vm86, %v143, %v161
    %vm174 = vcmask 523264
    %v176 = vsel %vm174, %v171, %v167
    %v178 = vsel %vm174, %v173, %v169
    %v181 = vcombine.high %v176, %v176
    %v183 = vunpack.c.l.s4 1966171168
    %v184 = vunpack.c.0.s8 %v183
    %v185 = vlaneseq
    %v186 = vshrl.u32 %v185, 7
    %v187 = vsub.s32 %v184, %v186
    %v188 = vrot.slane %v176, %v187
    %v190 = vunpack.c.l.s4 1966171168
    %v191 = vunpack.c.0.s8 %v190
    %v192 = vlaneseq
    %v193 = vshrl.u32 %v192, 7
    %v194 = vsub.s32 %v191, %v193
    %v195 = vrot.slane %v181, %v194
    %v196 = vcombine.high %v188, %v188
    %v197 = vcombine.high %v195, %v195
    %v199 = vunpack.c.l.s4 1966171168
    %v200 = vunpack.c.0.s8 %v199
    %v201 = vlaneseq
    %v202 = vshrl.u32 %v201, 7
    %v203 = vsub.s32 %v200, %v202
    %v204 = vrot.slane %v188, %v203
    %v206 = vunpack.c.l.s4 1966171168
    %v207 = vunpack.c.0.s8 %v206
    %v208 = vlaneseq
    %v209 = vshrl.u32 %v208, 7
    %v210 = vsub.s32 %v207, %v209
    %v211 = vrot.slane %v195, %v210
    %v213 = vunpack.c.l.s4 1966171168
    %v214 = vunpack.c.0.s8 %v213
    %v215 = vlaneseq
    %v216 = vshrl.u32 %v215, 7
    %v217 = vsub.s32 %v214, %v216
    %v218 = vrot.slane %v196, %v217
    %v220 = vunpack.c.l.s4 1966171168
    %v221 = vunpack.c.0.s8 %v220
    %v222 = vlaneseq
    %v223 = vshrl.u32 %v222, 7
    %v224 = vsub.s32 %v221, %v223
    %v225 = vrot.slane %v197, %v224
    %v226 = vcombine.high %v204, %v204
    %v227 = vcombine.high %v211, %v211
    %v228 = vcombine.high %v218, %v218
    %v229 = vcombine.high %v178, %v178
    %v231 = vunpack.c.l.s4 1966171168
    %v232 = vunpack.c.0.s8 %v231
    %v233 = vlaneseq
    %v234 = vshrl.u32 %v233, 7
    %v235 = vsub.s32 %v232, %v234
    %v236 = vrot.slane %v178, %v235
    %v238 = vunpack.c.l.s4 1966171168
    %v239 = vunpack.c.0.s8 %v238
    %v240 = vlaneseq
    %v241 = vshrl.u32 %v240, 7
    %v242 = vsub.s32 %v239, %v241
    %v243 = vrot.slane %v229, %v242
    %v244 = vcombine.high %v236, %v236
    %v245 = vcombine.high %v243, %v243
    %v247 = vunpack.c.l.s4 1966171168
    %v248 = vunpack.c.0.s8 %v247
    %v249 = vlaneseq
    %v250 = vshrl.u32 %v249, 7
    %v251 = vsub.s32 %v248, %v250
    %v252 = vrot.slane %v236, %v251
    %v254 = vunpack.c.l.s4 1966171168
    %v255 = vunpack.c.0.s8 %v254
    %v256 = vlaneseq
    %v257 = vshrl.u32 %v256, 7
    %v258 = vsub.s32 %v255, %v257
    %v259 = vrot.slane %v243, %v258
    %v261 = vunpack.c.l.s4 1966171168
    %v262 = vunpack.c.0.s8 %v261
    %v263 = vlaneseq
    %v264 = vshrl.u32 %v263, 7
    %v265 = vsub.s32 %v262, %v264
    %v266 = vrot.slane %v244, %v265
    %v268 = vunpack.c.l.s4 1966171168
    %v269 = vunpack.c.0.s8 %v268
    %v270 = vlaneseq
    %v271 = vshrl.u32 %v270, 7
    %v272 = vsub.s32 %v269, %v271
    %v273 = vrot.slane %v245, %v272
    %v274 = vcombine.high %v252, %v252
    %v275 = vcombine.high %v259, %v259
    %v276 = vcombine.high %v266, %v266
    %v277 = vld [vmem:[%s2] sm:$0xf]
    %v278 = vld [vmem:[%s2 + $0x4] sm:$0xf]
    %v279 = vld [vmem:[%s2 + $0x8] sm:$0xf]
    %v280 = vld [vmem:[%s2 + $0xc] sm:$0xf]
    %v281 = vld [vmem:[%s2 + $0x10] sm:$0xf]
    %v282 = vld [vmem:[%s2 + $0x14] sm:$0xf]
    %v283 = vld [vmem:[%s2 + $0x18] sm:$0xf]
    %v284 = vld [vmem:[%s2 + $0x1c] sm:$0xf]
    %v285 = vld [vmem:[%s2 + $0x20] sm:$0xf]
    %v286 = vld [vmem:[%s2 + $0x24] sm:$0xf]
    %v287 = vld [vmem:[%s2 + $0x28] sm:$0xf]
    %v288 = vld [vmem:[%s2 + $0x2c] sm:$0xf]
    %v289 = vcombine.low %v204, %v218
    %v290 = vcombine.low %v226, %v228
    %v291 = vcombine.low %v211, %v225
    %v292 = vcombine.low %v227, %v252
    %v294 = vunpack.c.l.s4 1966171168
    %v295 = vunpack.c.0.s8 %v294
    %v296 = vlaneseq
    %v297 = vshrl.u32 %v296, 7
    %v298 = vsub.s32 %v295, %v297
    %v299 = vrot.slane %v289, %v298
    %v301 = vunpack.c.l.s4 1966171168
    %v302 = vunpack.c.0.s8 %v301
    %v303 = vlaneseq
    %v304 = vshrl.u32 %v303, 7
    %v305 = vsub.s32 %v302, %v304
    %v306 = vrot.slane %v290, %v305
    %v308 = vunpack.c.l.s4 1966171168
    %v309 = vunpack.c.0.s8 %v308
    %v310 = vlaneseq
    %v311 = vshrl.u32 %v310, 7
    %v312 = vsub.s32 %v309, %v311
    %v313 = vrot.slane %v291, %v312
    %v315 = vunpack.c.l.s4 1966171168
    %v316 = vunpack.c.0.s8 %v315
    %v317 = vlaneseq
    %v318 = vshrl.u32 %v317, 7
    %v319 = vsub.s32 %v316, %v318
    %v320 = vrot.slane %v292, %v319
    %v321 = vcombine.low %v299, %v306
    %v322 = vcombine.low %v313, %v320
    %v324 = vunpack.c.l.s4 1966171168
    %v325 = vunpack.c.0.s8 %v324
    %v326 = vlaneseq
    %v327 = vshrl.u32 %v326, 7
    %v328 = vsub.s32 %v325, %v327
    %v329 = vrot.slane %v321, %v328
    %v331 = vunpack.c.l.s4 1966171168
    %v332 = vunpack.c.0.s8 %v331
    %v333 = vlaneseq
    %v334 = vshrl.u32 %v333, 7
    %v335 = vsub.s32 %v332, %v334
    %v336 = vrot.slane %v322, %v335
    %v337 = vcombine.low %v329, %v336
    %v338 = vcombine.low %v266, %v274
    %v339 = vcombine.low %v276, %v259
    %v340 = vcombine.low %v273, %v275
    %v342 = vunpack.c.l.s4 1966171168
    %v343 = vunpack.c.0.s8 %v342
    %v344 = vlaneseq
    %v345 = vshrl.u32 %v344, 7
    %v346 = vsub.s32 %v343, %v345
    %v347 = vrot.slane %v338, %v346
    %v349 = vunpack.c.l.s4 1966171168
    %v350 = vunpack.c.0.s8 %v349
    %v351 = vlaneseq
    %v352 = vshrl.u32 %v351, 7
    %v353 = vsub.s32 %v350, %v352
    %v354 = vrot.slane %v339, %v353
    %v356 = vunpack.c.l.s4 1966171168
    %v357 = vunpack.c.0.s8 %v356
    %v358 = vlaneseq
    %v359 = vshrl.u32 %v358, 7
    %v360 = vsub.s32 %v357, %v359
    %v361 = vrot.slane %v340, %v360
    %v362 = vcombine.low %v347, %v354
    %v364 = vunpack.c.l.s4 1966171168
    %v365 = vunpack.c.0.s8 %v364
    %v366 = vlaneseq
    %v367 = vshrl.u32 %v366, 7
    %v368 = vsub.s32 %v365, %v367
    %v369 = vrot.slane %v362, %v368
    %v371 = vunpack.c.l.s4 1966171168
    %v372 = vunpack.c.0.s8 %v371
    %v373 = vlaneseq
    %v374 = vshrl.u32 %v373, 7
    %v375 = vsub.s32 %v372, %v374
    %v376 = vrot.slane %v361, %v375
    %v377 = vcombine.low %v369, %v376
    %v390 = vunpack.c.l.b16 %v277
    %v391 = vunpack.c.l.b16 %v278
    %v392 = vunpack.c.l.b16 %v279
    %v393 = vunpack.c.l.b16 %v280
    %v394 = vunpack.c.l.b16 %v281
    %v395 = vunpack.c.l.b16 %v282
    %v396 = vunpack.c.l.b16 %v283
    %v397 = vunpack.c.l.b16 %v284
    %v398 = vunpack.c.l.b16 %v285
    %v399 = vunpack.c.l.b16 %v286
    %v400 = vunpack.c.l.b16 %v287
    %v401 = vunpack.c.l.b16 %v288
    %v402 = vpack.c.b16 %v391, %v390
    %v403 = vpack.c.b16 %v393, %v392
    %v404 = vpack.c.b16 %v395, %v394
    %v405 = vpack.c.b16 %v397, %v396
    %v406 = vpack.c.b16 %v399, %v398
    %v407 = vpack.c.b16 %v401, %v400
    %vm414 = vcmask 785408
    %v416 = vsel %vm414, %v337, 0
    %v419 = vsel %vm414, %v377, 0
    %421 = vmatprep.subr.bf16.mxu0 0
    %422 = vmatpush1.bf16.msra.mxu0 %v402
    %423 = vmatprep.subr.bf16.mxu0 0
    %424 = vmatpush1.bf16.msra.mxu0 %v403
    %425 = vmatprep.subr.bf16.mxu0 0
    %426 = vmatpush1.bf16.msra.mxu0 %v404
    %427 = vmatprep.subr.bf16.mxu0 0
    %428 = vmatpush1.bf16.msra.mxu0 %v405
    %429 = vmatprep.subr.bf16.mxu0 0
    %430 = vmatpush1.bf16.msra.mxu0 %v406
    %431 = vmatprep.subr.bf16.mxu0 0
    %432 = vmatpush1.bf16.msra.mxu0 %v407
    %433 = vmatprep.subr.bf16.mxu0 0
    %434 = vmatpush1.bf16.msra.mxu0 0
    %435 = vmatprep.subr.bf16.mxu0 0
    %436 = vmatpush1.bf16.msra.mxu0 0
    %437 = vmatprep.subr.bf16.mxu0 0
    %438 = vmatpush1.bf16.msra.mxu0 0
    %439 = vmatprep.subr.bf16.mxu0 0
    %440 = vmatpush1.bf16.msra.mxu0 0
    %441 = vmatprep.subr.bf16.mxu0 0
    %442 = vmatpush1.bf16.msra.mxu0 0
    %443 = vmatprep.subr.bf16.mxu0 0
    %444 = vmatpush1.bf16.msra.mxu0 0
    %445 = vmatprep.subr.bf16.mxu0 0
    %446 = vmatpush1.bf16.msra.mxu0 0
    %447 = vmatprep.subr.bf16.mxu0 0
    %448 = vmatpush1.bf16.msra.mxu0 0
    %449 = vmatprep.subr.bf16.mxu0 0
    %450 = vmatpush1.bf16.msra.mxu0 0
    %451 = vmatprep.subr.bf16.mxu0 0
    %452 = vmatpush1.bf16.msra.mxu0 0
    %453 = vmatprep.mubr.bf16.mxu0 0
    %454 = vmatmul.mubr.bf16.gmra.mrb[0].mxu0 %v416
    %v455 = vpop.f32.mrb[0].mxu0
    %v456 = vadd.f32 0.0, %v455
    %v457 = vpop.f32.mrb[0].mxu0
    %v458 = vpop.f32.mrb[0].mxu0
    %v459 = vadd.f32 0.0, %v458
    %v460 = vpop.f32.mrb[0].mxu0
    %461 = vmatprep.mubr.bf16.mxu0 0
    %462 = vmatmul.mubr.bf16.gmra.mrb[0].mxu0 %v419
    %v463 = vpop.f32.mrb[0].mxu0
    %v464 = vadd.f32 0.0, %v463
    %v465 = vpop.f32.mrb[0].mxu0
    %v466 = vpop.f32.mrb[0].mxu0
    %v467 = vadd.f32 0.0, %v466
    %v468 = vpop.f32.mrb[0].mxu0
    %469 = vdwg.mxu0
    %v474 = vcombine.high %v456, %v456
    %v476 = vunpack.c.l.s4 1983009808
    %v477 = vunpack.c.0.s8 %v476
    %v478 = vlaneseq
    %v479 = vshrl.u32 %v478, 7
    %v480 = vsub.s32 %v477, %v479
    %v481 = vrot.slane %v456, %v480
    %v483 = vunpack.c.l.s4 1983009808
    %v484 = vunpack.c.0.s8 %v483
    %v485 = vlaneseq
    %v486 = vshrl.u32 %v485, 7
    %v487 = vsub.s32 %v484, %v486
    %v488 = vrot.slane %v474, %v487
    %v489 = vcombine.high %v481, %v481
    %v490 = vcombine.high %v488, %v488
    %v491 = vcombine.high %v459, %v459
    %v493 = vunpack.c.l.s4 1983009808
    %v494 = vunpack.c.0.s8 %v493
    %v495 = vlaneseq
    %v496 = vshrl.u32 %v495, 7
    %v497 = vsub.s32 %v494, %v496
    %v498 = vrot.slane %v459, %v497
    %v500 = vunpack.c.l.s4 1983009808
    %v501 = vunpack.c.0.s8 %v500
    %v502 = vlaneseq
    %v503 = vshrl.u32 %v502, 7
    %v504 = vsub.s32 %v501, %v503
    %v505 = vrot.slane %v491, %v504
    %v506 = vcombine.high %v498, %v498
    %v507 = vcombine.high %v505, %v505
    %v508 = vcombine.high %v464, %v464
    %v510 = vunpack.c.l.s4 1983009808
    %v511 = vunpack.c.0.s8 %v510
    %v512 = vlaneseq
    %v513 = vshrl.u32 %v512, 7
    %v514 = vsub.s32 %v511, %v513
    %v515 = vrot.slane %v464, %v514
    %v517 = vunpack.c.l.s4 1983009808
    %v518 = vunpack.c.0.s8 %v517
    %v519 = vlaneseq
    %v520 = vshrl.u32 %v519, 7
    %v521 = vsub.s32 %v518, %v520
    %v522 = vrot.slane %v508, %v521
    %v523 = vcombine.high %v515, %v515
    %v524 = vcombine.high %v522, %v522
    %v526 = vunpack.c.l.s4 1983009808
    %v527 = vunpack.c.0.s8 %v526
    %v528 = vlaneseq
    %v529 = vshrl.u32 %v528, 7
    %v530 = vsub.s32 %v527, %v529
    %v531 = vrot.slane %v467, %v530
    %v532 = vcombine.high %v531, %v531
    %v533 = vcombine.low %v481, %v489
    %v534 = vcombine.low %v488, %v490
    %v536 = vunpack.c.l.s4 1983009808
    %v537 = vunpack.c.0.s8 %v536
    %v538 = vlaneseq
    %v539 = vshrl.u32 %v538, 7
    %v540 = vsub.s32 %v537, %v539
    %v541 = vrot.slane %v533, %v540
    %v543 = vunpack.c.l.s4 1983009808
    %v544 = vunpack.c.0.s8 %v543
    %v545 = vlaneseq
    %v546 = vshrl.u32 %v545, 7
    %v547 = vsub.s32 %v544, %v546
    %v548 = vrot.slane %v534, %v547
    %v549 = vcombine.low %v541, %v548
    %v550 = vcombine.low %v498, %v506
    %v552 = vunpack.c.l.s4 1983009808
    %v553 = vunpack.c.0.s8 %v552
    %v554 = vlaneseq
    %v555 = vshrl.u32 %v554, 7
    %v556 = vsub.s32 %v553, %v555
    %v557 = vrot.slane %v550, %v556
    %v559 = vunpack.c.l.s4 1983009808
    %v560 = vunpack.c.0.s8 %v559
    %v561 = vlaneseq
    %v562 = vshrl.u32 %v561, 7
    %v563 = vsub.s32 %v560, %v562
    %v564 = vrot.slane %v505, %v563
    %v565 = vcombine.low %v557, %v564
    %v566 = vcombine.low %v507, %v515
    %v567 = vcombine.low %v523, %v522
    %v569 = vunpack.c.l.s4 1983009808
    %v570 = vunpack.c.0.s8 %v569
    %v571 = vlaneseq
    %v572 = vshrl.u32 %v571, 7
    %v573 = vsub.s32 %v570, %v572
    %v574 = vrot.slane %v566, %v573
    %v576 = vunpack.c.l.s4 1983009808
    %v577 = vunpack.c.0.s8 %v576
    %v578 = vlaneseq
    %v579 = vshrl.u32 %v578, 7
    %v580 = vsub.s32 %v577, %v579
    %v581 = vrot.slane %v567, %v580
    %v582 = vcombine.low %v574, %v581
    %v583 = vcombine.low %v524, %v531
    %v585 = vunpack.c.l.s4 1983009808
    %v586 = vunpack.c.0.s8 %v585
    %v587 = vlaneseq
    %v588 = vshrl.u32 %v587, 7
    %v589 = vsub.s32 %v586, %v588
    %v590 = vrot.slane %v583, %v589
    %v592 = vunpack.c.l.s4 1983009808
    %v593 = vunpack.c.0.s8 %v592
    %v594 = vlaneseq
    %v595 = vshrl.u32 %v594, 7
    %v596 = vsub.s32 %v593, %v595
    %v597 = vrot.slane %v532, %v596
    %v598 = vcombine.low %v590, %v597
    %vm603 = vcmask 1045504
    %v604 = vsel %vm603, %v565, -inf
    %v605 = vmax.f32 %v549, %v604
    %v606 = vrot.slane %v605, 4
    %v607 = vmax.f32 %v605, %v606
    %v608 = vrot.slane %v607, 2
    %v609 = vmax.f32 %v607, %v608
    %v610 = vrot.slane %v609, 1
    %v611 = vmax.f32 %v609, %v610
    %v612 = vsel %vm603, %v598, -inf
    %v613 = vmax.f32 %v582, %v612
    %v614 = vrot.slane %v613, 4
    %v615 = vmax.f32 %v613, %v614
    %v616 = vrot.slane %v615, 2
    %v617 = vmax.f32 %v615, %v616
    %v618 = vrot.slane %v617, 1
    %v619 = vmax.f32 %v617, %v618
    %v620 = vld [vmem:[%s3] sm:$0x1]
    %v622 = vlaneseq
    %v623 = vshrl.u32 %v622, 7
    %v624 = vsub.s32 0, %v623
    %v625 = vrot.slane %v620, %v624
    %v627 = vadd.f32 %v611, %v625
    %v628 = vadd.f32 %v619, %v625
    %v629 = vxor.u32 %v627, 2147483648
    %v630 = vxor.u32 %v628, 2147483648
    %v631 = vmul.f32 %v629, 1.442695
    %v632 = vpow.pop %v631
    %v633 = vmul.f32 %v630, 1.442695
    %v634 = vpow.pop %v633
    %v635 = vadd.f32 %v632, 1.0
    %v636 = vadd.f32 %v634, 1.0
    %v637 = vrcp.pop %v635
    %v638 = vmul.f32 1.0, %v637
    %v639 = vrcp.pop %v636
    %v640 = vmul.f32 1.0, %v639
    %v641 = vpack.c.bf16 %v638, %v638
    %v642 = vpack.c.bf16 %v640, %v640
    %v643 = vld [vmem:[%s4] sm:$0xf]
    %v644 = vld [vmem:[%s4 + $0x4] sm:$0xf]
    %v645 = vld [vmem:[%s4 + $0x8] sm:$0xf]
    %v646 = vld [vmem:[%s4 + $0xc] sm:$0xf]
    %v647 = vld [vmem:[%s4 + $0x10] sm:$0xf]
    %v648 = vld [vmem:[%s4 + $0x14] sm:$0xf]
    %v649 = vld [vmem:[%s4 + $0x18] sm:$0xf]
    %v650 = vld [vmem:[%s4 + $0x1c] sm:$0xf]
    %v651 = vld [vmem:[%s4 + $0x20] sm:$0xf]
    %v652 = vld [vmem:[%s4 + $0x24] sm:$0xf]
    %v653 = vld [vmem:[%s4 + $0x28] sm:$0xf]
    %v654 = vld [vmem:[%s4 + $0x2c] sm:$0xf]
    %v655 = vld [vmem:[%s4 + $0x30] sm:$0xf]
    %v656 = vld [vmem:[%s4 + $0x34] sm:$0xf]
    %v657 = vld [vmem:[%s4 + $0x38] sm:$0xf]
    %v658 = vld [vmem:[%s4 + $0x3c] sm:$0xf]
    %v659 = vld [vmem:[%s5] sm:$0x1]
    %v661 = vlaneseq
    %v662 = vshrl.u32 %v661, 7
    %v663 = vsub.s32 0, %v662
    %v664 = vrot.slane %v659, %v663
    %v668 = vunpack.c.l.b16 %v641
    %v669 = vunpack.c.l.b16 %v642
    %v670 = vrot.slane %v669, 7
    %vm671 = vcmask 1041409
    %v672 = vsel %vm671, %v670, %v668
    %v673 = vpack.c.b16 %v672, %v672
    %v691 = vunpack.c.l.b16 %v643
    %v692 = vunpack.c.l.b16 %v644
    %v693 = vunpack.c.l.b16 %v645
    %v694 = vunpack.c.l.b16 %v646
    %v695 = vunpack.c.l.b16 %v647
    %v696 = vunpack.c.l.b16 %v648
    %v697 = vunpack.c.l.b16 %v649
    %v698 = vunpack.c.l.b16 %v650
    %v699 = vunpack.c.l.b16 %v651
    %v700 = vunpack.c.l.b16 %v652
    %v701 = vunpack.c.l.b16 %v653
    %v702 = vunpack.c.l.b16 %v654
    %v703 = vunpack.c.l.b16 %v655
    %v704 = vunpack.c.l.b16 %v656
    %v705 = vunpack.c.l.b16 %v657
    %v706 = vunpack.c.l.b16 %v658
    %v707 = vpack.c.b16 %v692, %v691
    %v708 = vpack.c.b16 %v694, %v693
    %v709 = vpack.c.b16 %v696, %v695
    %v710 = vpack.c.b16 %v698, %v697
    %v711 = vpack.c.b16 %v700, %v699
    %v712 = vpack.c.b16 %v702, %v701
    %v713 = vpack.c.b16 %v704, %v703
    %v714 = vpack.c.b16 %v706, %v705
    %723 = vmatprep.subr.bf16.mxu0 0
    %724 = vmatpush1.bf16.msra.mxu0 %v707
    %725 = vmatprep.subr.bf16.mxu0 0
    %726 = vmatpush1.bf16.msra.mxu0 %v708
    %727 = vmatprep.subr.bf16.mxu0 0
    %728 = vmatpush1.bf16.msra.mxu0 %v709
    %729 = vmatprep.subr.bf16.mxu0 0
    %730 = vmatpush1.bf16.msra.mxu0 %v710
    %731 = vmatprep.subr.bf16.mxu0 0
    %732 = vmatpush1.bf16.msra.mxu0 %v711
    %733 = vmatprep.subr.bf16.mxu0 0
    %734 = vmatpush1.bf16.msra.mxu0 %v712
    %735 = vmatprep.subr.bf16.mxu0 0
    %736 = vmatpush1.bf16.msra.mxu0 %v713
    %737 = vmatprep.subr.bf16.mxu0 0
    %738 = vmatpush1.bf16.msra.mxu0 %v714
    %739 = vmatprep.subr.bf16.mxu0 0
    %740 = vmatpush1.bf16.msra.mxu0 0
    %741 = vmatprep.subr.bf16.mxu0 0
    %742 = vmatpush1.bf16.msra.mxu0 0
    %743 = vmatprep.subr.bf16.mxu0 0
    %744 = vmatpush1.bf16.msra.mxu0 0
    %745 = vmatprep.subr.bf16.mxu0 0
    %746 = vmatpush1.bf16.msra.mxu0 0
    %747 = vmatprep.subr.bf16.mxu0 0
    %748 = vmatpush1.bf16.msra.mxu0 0
    %749 = vmatprep.subr.bf16.mxu0 0
    %750 = vmatpush1.bf16.msra.mxu0 0
    %751 = vmatprep.subr.bf16.mxu0 0
    %752 = vmatpush1.bf16.msra.mxu0 0
    %753 = vmatprep.subr.bf16.mxu0 0
    %754 = vmatpush1.bf16.msra.mxu0 0
    %755 = vmatprep.mubr.bf16.mxu0 0
    %756 = vmatmul.mubr.bf16.gmra.mrb[0].mxu0 %v673
    %v757 = vpop.f32.mrb[0].mxu0
    %v758 = vadd.f32 %v664, %v757
    %v759 = vpop.f32.mrb[0].mxu0
    %v760 = vpop.f32.mrb[0].mxu0
    %v761 = vpop.f32.mrb[0].mxu0
    %762 = vdwg.mxu0
    %v763 = vxor.u32 %v758, 2147483648
    %v764 = vmul.f32 %v763, 1.442695
    %v765 = vpow.pop %v764
    %v766 = vadd.f32 %v765, 1.0
    %v767 = vrcp.pop %v766
    %v768 = vmul.f32 1.0, %v767
    %v769 = vpack.c.bf16 %v768, %v768
    %v770 = vld [vmem:[%s6] sm:$0xf]
    %v771 = vld [vmem:[%s6 + $0x4] sm:$0xf]
    %v772 = vld [vmem:[%s6 + $0x8] sm:$0xf]
    %v773 = vld [vmem:[%s6 + $0xc] sm:$0xf]
    %v774 = vld [vmem:[%s6 + $0x10] sm:$0xf]
    %v775 = vld [vmem:[%s6 + $0x14] sm:$0xf]
    %v776 = vld [vmem:[%s6 + $0x18] sm:$0x1]
    %v777 = vld [vmem:[%s7] sm:$0x1]
    %v779 = vlaneseq
    %v780 = vshrl.u32 %v779, 7
    %v781 = vsub.s32 0, %v780
    %v782 = vrot.slane %v777, %v781
    %v791 = vunpack.c.l.b16 %v770
    %v792 = vunpack.c.l.b16 %v771
    %v793 = vunpack.c.l.b16 %v772
    %v794 = vunpack.c.l.b16 %v773
    %v795 = vunpack.c.l.b16 %v774
    %v796 = vunpack.c.l.b16 %v775
    %v797 = vunpack.c.l.b16 %v776
    %v798 = vpack.c.b16 %v792, %v791
    %v799 = vpack.c.b16 %v794, %v793
    %v800 = vpack.c.b16 %v796, %v795
    %v801 = vpack.c.b16 %v797, %v797
    %vm805 = vcmask 408576
    %v807 = vsel %vm805, %v769, 0
    %vm809 = vcmask 1040384
    %v811 = vsel %vm809, %v801, 0
    %813 = vmatprep.subr.bf16.mxu0 0
    %814 = vmatpush1.bf16.msra.mxu0 %v798
    %815 = vmatprep.subr.bf16.mxu0 0
    %816 = vmatpush1.bf16.msra.mxu0 %v799
    %817 = vmatprep.subr.bf16.mxu0 0
    %818 = vmatpush1.bf16.msra.mxu0 %v800
    %819 = vmatprep.subr.bf16.mxu0 0
    %820 = vmatpush1.bf16.msra.mxu0 %v811
    %821 = vmatprep.subr.bf16.mxu0 0
    %822 = vmatpush1.bf16.msra.mxu0 0
    %823 = vmatprep.subr.bf16.mxu0 0
    %824 = vmatpush1.bf16.msra.mxu0 0
    %825 = vmatprep.subr.bf16.mxu0 0
    %826 = vmatpush1.bf16.msra.mxu0 0
    %827 = vmatprep.subr.bf16.mxu0 0
    %828 = vmatpush1.bf16.msra.mxu0 0
    %829 = vmatprep.subr.bf16.mxu0 0
    %830 = vmatpush1.bf16.msra.mxu0 0
    %831 = vmatprep.subr.bf16.mxu0 0
    %832 = vmatpush1.bf16.msra.mxu0 0
    %833 = vmatprep.subr.bf16.mxu0 0
    %834 = vmatpush1.bf16.msra.mxu0 0
    %835 = vmatprep.subr.bf16.mxu0 0
    %836 = vmatpush1.bf16.msra.mxu0 0
    %837 = vmatprep.subr.bf16.mxu0 0
    %838 = vmatpush1.bf16.msra.mxu0 0
    %839 = vmatprep.subr.bf16.mxu0 0
    %840 = vmatpush1.bf16.msra.mxu0 0
    %841 = vmatprep.subr.bf16.mxu0 0
    %842 = vmatpush1.bf16.msra.mxu0 0
    %843 = vmatprep.subr.bf16.mxu0 0
    %844 = vmatpush1.bf16.msra.mxu0 0
    %845 = vmatprep.mubr.bf16.mxu0 0
    %846 = vmatmul.mubr.bf16.gmra.mrb[0].mxu0 %v807
    %v847 = vpop.f32.mrb[0].mxu0
    %v848 = vadd.f32 %v782, %v847
    %v849 = vpop.f32.mrb[0].mxu0
    %v850 = vpop.f32.mrb[0].mxu0
    %v851 = vpop.f32.mrb[0].mxu0
    %852 = vdwg.mxu0
    %vm853 = vcmask 33792
    %v854 = vsel %vm853, %v848, -inf
    %855 = vmax.xlane.f32.xlu0 %v854
    %v856 = vpop.xlane.xlu0 %855
    %v857 = vsub.f32 %v848, %v856
    %v858 = vmul.f32 %v857, 1.442695
    %v859 = vpow.pop %v858
    %v860 = vsel %vm853, %v859, 0.0
    %861 = vadd.xlane.f32.xlu0 %v860
    %v862 = vpop.xlane.xlu0 %861
    %v863 = vrcp.pop %v862
    %v864 = vmul.f32 %v859, %v863
    %865 = vst.msk [vmem:[#allocation2] sm:$0x3] %vm853, %v864
    // Predicated region
    $region34: #{cnn_global_max_pooling.1} parent=1 // pred_check
      _
    $region35: #{cnn_global_max_pooling.1} parent=1 // pred_check_branch
      %867 = sbr.rel (0) target = $region37
    $region36: #{cnn_global_max_pooling.1} parent=1 // pred_region
      %s869 = ssub.s32 32, 32
      %870 = vsyncadd [#allocation3], %s869
      %s872 = sshll.u32 [#allocation2], 4
      %s873 = int_to_ptr.vmem [resolvable:$true] %s872
      %875 = dma.vmem_to_hbm [thread:$0]  %s873, 32, %s8, [#allocation3]
    $region37: #{cnn_global_max_pooling.1} parent=1 // pred_fallthru
      _
    // Predicated region
    $region38: #{cnn_global_max_pooling.1} parent=1 // pred_check
      _
    $region39: #{cnn_global_max_pooling.1} parent=1 // pred_check_branch
      %877 = sbr.rel (0) target = $region41
    $region40: #{cnn_global_max_pooling.1} parent=1 // pred_region
      %878 = dma.done [#allocation3], 32
    $region41: #{cnn_global_max_pooling.1} parent=1 // pred_fallthru
      _
    %879 = vsyncpa [#allocation3], 1

</llo_original>
